<compile_context>
chip_gen: v5e
topology: v5e:2x2
jax: 0.10.0
libtpu: 0.0.40
codegen_flags: <defaults>
</compile_context>

<pallas_src>
import functools

import jax
import jax.numpy as jnp
from jax.experimental import pallas as pl
from jax.experimental.pallas import tpu as pltpu

ALPHA = 0.25
GAMMA = 2.0            # applied as an explicit square (w * w) in the kernel

NUM_CORE_SPLITS = 2    # engages both TensorCores on v7x; harmless on v5e/v6e
_TARGET_TILE_BYTES = 2 * 1024 * 1024   # ~2 MiB of logits per grid step


def _round_up(x, m):
    return ((x + m - 1) // m) * m


def _focal_loss_kernel(logits_ref, targets_ref, out_ref, *, n_total, tile_n,
                       steps_per_core):
    c_split = pl.program_id(0)   # "parallel" axis (core split)
    step = pl.program_id(1)      # "arbitrary" reduction axis

    @pl.when(step == 0)
    def _():
        out_ref[...] = jnp.zeros_like(out_ref)

    x = logits_ref[...].astype(jnp.float32)        # (tile_n, C)
    t = targets_ref[...]                           # (tile_n, 1) int32

    # Numerically stable softmax pieces along the class (lane) axis.
    m = jnp.max(x, axis=-1, keepdims=True)         # (tile_n, 1)
    z = x - m
    e = jnp.exp(z)
    s = jnp.sum(e, axis=-1, keepdims=True)         # (tile_n, 1)

    # Gather the target (shifted) logit with a select — no float one-hot mul.
    col = jax.lax.broadcasted_iota(jnp.int32, x.shape, 1)          # (tile_n, C)
    z_t = jnp.sum(jnp.where(col == t, z, 0.0), axis=-1, keepdims=True)

    ce = jnp.log(s) - z_t                          # per-sample cross entropy
    pt = jnp.exp(-ce)
    w = 1.0 - pt
    focal = ALPHA * w * w * ce                     # gamma == 2 -> explicit square

    # Mask rows beyond the true batch size (tail of padded / redundant tiles).
    base = (c_split * steps_per_core + step) * tile_n
    row = jax.lax.broadcasted_iota(jnp.int32, (tile_n, 1), 0)
    focal = jnp.where(base + row < n_total, focal, 0.0)

    # Per-core partial sum, broadcast over the resident (8, 128) output tile.
    out_ref[...] += jnp.sum(focal)


def focal_loss(outputs, targets):
    """outputs: [N, C] float logits (f32 or bf16); targets: [N] int class ids."""
    n, c = outputs.shape
    targets_2d = targets.reshape(n, 1).astype(jnp.int32)

    # Tile size: multiple of 8 (f32 sublane), ~2 MiB of logits per step,
    # never larger than the (8-rounded) batch.
    bytes_per_row = c * jnp.dtype(outputs.dtype).itemsize
    tile_n = max(8, min(1024, (_TARGET_TILE_BYTES // max(bytes_per_row, 1)) // 8 * 8))
    tile_n = min(tile_n, _round_up(n, 8))

    num_blocks = pl.cdiv(n, tile_n)
    steps_per_core = pl.cdiv(num_blocks, NUM_CORE_SPLITS)
    last_block = num_blocks - 1

    def batch_block_map(cs, i):
        # Clamp so redundant steps (odd block counts) never DMA out of bounds;
        # their rows are fully masked in the kernel anyway.
        return (jnp.minimum(cs * steps_per_core + i, last_block), 0)

    kernel = functools.partial(_focal_loss_kernel, n_total=n, tile_n=tile_n,
                               steps_per_core=steps_per_core)

    out = pl.pallas_call(
        kernel,
        out_shape=jax.ShapeDtypeStruct((NUM_CORE_SPLITS * 8, 128), jnp.float32),
        grid=(NUM_CORE_SPLITS, steps_per_core),
        in_specs=[
            pl.BlockSpec((tile_n, c), batch_block_map),
            pl.BlockSpec((tile_n, 1), batch_block_map),
        ],
        out_specs=pl.BlockSpec((8, 128), lambda cs, i: (cs, 0)),
        compiler_params=pltpu.CompilerParams(
            dimension_semantics=("parallel", "arbitrary")),
    )(outputs, targets_2d)

    # Each core's (8,128) tile holds its partial sum replicated; combine + mean
    # with the true N.
    partials = out[::8, 0]                         # (NUM_CORE_SPLITS,)
    return jnp.sum(partials) / n


if __name__ == "__main__":
    key = jax.random.PRNGKey(0)
    k1, k2, k3, k4 = jax.random.split(key, 4)

    def reference(logits, tgts):
        logp = jax.nn.log_softmax(logits.astype(jnp.float32), axis=-1)
        ce = -jnp.take_along_axis(logp, tgts[:, None], axis=-1)[:, 0]
        pt = jnp.exp(-ce)
        return jnp.mean(ALPHA * (1.0 - pt) ** GAMMA * ce)

    # Case 1: small batch, tiny class count.
    N1, C1 = 8, 16
    logits1 = jax.random.normal(k1, (N1, C1), dtype=jnp.float32)
    targets1 = jax.random.randint(k2, (N1,), 0, C1, dtype=jnp.int32)
    loss1 = focal_loss(logits1, targets1)
    jax.block_until_ready(loss1)
    ref1 = reference(logits1, targets1)
    assert jnp.allclose(loss1, ref1, rtol=1e-5, atol=1e-6), (loss1, ref1)

    # Case 2: batch not a multiple of 8 / the tile (exercises tail masking).
    N2, C2 = 37, 16
    logits2 = jax.random.normal(k3, (N2, C2), dtype=jnp.float32)
    targets2 = jax.random.randint(k4, (N2,), 0, C2, dtype=jnp.int32)
    loss2 = focal_loss(logits2, targets2)
    jax.block_until_ready(loss2)
    ref2 = reference(logits2, targets2)
    assert jnp.allclose(loss2, ref2, rtol=1e-5, atol=1e-6), (loss2, ref2)

    print("KERNEL_OK")
</pallas_src>

<mosaic_0001>
module attributes {stable_mosaic.version = 11 : i64} {
  func.func @_focal_loss_kernel(%arg0: i32, %arg1: i32, %arg2: memref<8x16xf32, #tpu.memory_space<vmem>>, %arg3: memref<8x1xi32, #tpu.memory_space<vmem>>, %arg4: memref<8x128xf32, #tpu.memory_space<vmem>>) attributes {dimension_semantics = [#tpu.dimension_semantics<parallel>, #tpu.dimension_semantics<arbitrary>], iteration_bounds = array<i64: 2, 1>, scalar_prefetch = 0 : i64, scratch_operands = 0 : i64, tpu.core_type = #tpu.core_type<tc>, window_params = [{transform_indices = @transform_0, window_bounds = array<i64: 8, 16>}, {transform_indices = @transform_1, window_bounds = array<i64: 8, 1>}, {transform_indices = @transform_2, window_bounds = array<i64: 8, 128>}]} {
    %c0_i32 = arith.constant 0 : i32
    %0 = arith.cmpi eq, %arg1, %c0_i32 : i32
    %1 = arith.extui %0 : i1 to i32
    %c0_i32_0 = arith.constant 0 : i32
    %2 = arith.cmpi ne, %1, %c0_i32_0 : i32
    scf.if %2 {
      %cst_17 = arith.constant 0.000000e+00 : f32
      %48 = vector.broadcast %cst_17 : f32 to vector<8x128xf32>
      %c0_18 = arith.constant 0 : index
      %c0_19 = arith.constant 0 : index
      %49 = vector.load %arg4[%c0_18, %c0_19] : memref<8x128xf32, #tpu.memory_space<vmem>>, vector<8x128xf32>
      tpu.vector_store %arg4[%c0_18, %c0_19], %48 {strides = array<i32>} : memref<8x128xf32, #tpu.memory_space<vmem>>, vector<8x128xf32>,
    } else {
    }
    %c0 = arith.constant 0 : index
    %c0_1 = arith.constant 0 : index
    %3 = vector.load %arg2[%c0, %c0_1] : memref<8x16xf32, #tpu.memory_space<vmem>>, vector<8x16xf32>
    %c0_2 = arith.constant 0 : index
    %c0_3 = arith.constant 0 : index
    %4 = vector.load %arg3[%c0_2, %c0_3] : memref<8x1xi32, #tpu.memory_space<vmem>>, vector<8x1xi32>
    %cst = arith.constant dense<0xFF800000> : vector<8xf32>
    %5 = vector.multi_reduction <maximumf>, %3, %cst [1] : vector<8x16xf32> to vector<8xf32>
    %6 = vector.shape_cast %5 : vector<8xf32> to vector<8x1xf32>
    %7 = vector.broadcast %6 : vector<8x1xf32> to vector<8x16xf32>
    %8 = arith.subf %3, %7 : vector<8x16xf32>
    %9 = math.exp %8 : vector<8x16xf32>
    %cst_4 = arith.constant dense<0.000000e+00> : vector<8xf32>
    %10 = vector.multi_reduction <add>, %9, %cst_4 [1] : vector<8x16xf32> to vector<8xf32>
    %11 = vector.shape_cast %10 : vector<8xf32> to vector<8x1xf32>
    %12 = tpu.iota {dimensions = array<i32: 1>} : vector<8x16xi32>
    %13 = vector.broadcast %4 : vector<8x1xi32> to vector<8x16xi32>
    %14 = arith.cmpi eq, %12, %13 : vector<8x16xi32>
    %cst_5 = arith.constant 0.000000e+00 : f32
    %15 = vector.broadcast %cst_5 : f32 to vector<8x16xf32>
    %16 = arith.select %14, %8, %15 : vector<8x16xi1>, vector<8x16xf32>
    %cst_6 = arith.constant dense<0.000000e+00> : vector<8xf32>
    %17 = vector.multi_reduction <add>, %16, %cst_6 [1] : vector<8x16xf32> to vector<8xf32>
    %18 = vector.shape_cast %17 : vector<8xf32> to vector<8x1xf32>
    %19 = math.log %11 : vector<8x1xf32>
    %20 = arith.subf %19, %18 : vector<8x1xf32>
    %cst_7 = arith.constant 0.000000e+00 : f32
    %21 = vector.broadcast %cst_7 : f32 to vector<8x1xf32>
    %22 = arith.subf %21, %20 : vector<8x1xf32>
    %23 = math.exp %22 : vector<8x1xf32>
    %cst_8 = arith.constant 1.000000e+00 : f32
    %24 = vector.broadcast %cst_8 : f32 to vector<8x1xf32>
    %25 = arith.subf %24, %23 : vector<8x1xf32>
    %cst_9 = arith.constant 2.500000e-01 : f32
    %26 = vector.broadcast %cst_9 : f32 to vector<8x1xf32>
    %27 = arith.mulf %26, %25 : vector<8x1xf32>
    %28 = arith.mulf %27, %25 : vector<8x1xf32>
    %29 = arith.mulf %28, %20 : vector<8x1xf32>
    %c1_i32 = arith.constant 1 : i32
    %30 = arith.muli %arg0, %c1_i32 : i32
    %31 = arith.addi %30, %arg1 : i32
    %c8_i32 = arith.constant 8 : i32
    %32 = arith.muli %31, %c8_i32 : i32
    %33 = tpu.iota {dimensions = array<i32: 0>} : vector<8x1xi32>
    %34 = vector.broadcast %32 : i32 to vector<8x1xi32>
    %35 = arith.addi %34, %33 : vector<8x1xi32>
    %c8_i32_10 = arith.constant 8 : i32
    %36 = vector.broadcast %c8_i32_10 : i32 to vector<8x1xi32>
    %37 = arith.cmpi slt, %35, %36 : vector<8x1xi32>
    %cst_11 = arith.constant 0.000000e+00 : f32
    %38 = vector.broadcast %cst_11 : f32 to vector<8x1xf32>
    %39 = arith.select %37, %29, %38 : vector<8x1xi1>, vector<8x1xf32>
    %c0_12 = arith.constant 0 : index
    %c0_13 = arith.constant 0 : index
    %40 = vector.load %arg4[%c0_12, %c0_13] : memref<8x128xf32, #tpu.memory_space<vmem>>, vector<8x128xf32>
    %41 = vector.shape_cast %39 : vector<8x1xf32> to vector<1x8x1xf32>
    %cst_14 = arith.constant dense<0.000000e+00> : vector<1xf32>
    %42 = vector.multi_reduction <add>, %41, %cst_14 [1, 2] : vector<1x8x1xf32> to vector<1xf32>
    %43 = vector.shape_cast %42 : vector<1xf32> to vector<1x1x1xf32>
    %44 = vector.extract %43[0, 0, 0] : f32 from vector<1x1x1xf32>
    %45 = vector.broadcast %44 : f32 to vector<8x128xf32>
    %46 = arith.addf %40, %45 : vector<8x128xf32>
    %c0_15 = arith.constant 0 : index
    %c0_16 = arith.constant 0 : index
    %47 = vector.load %arg4[%c0_15, %c0_16] : memref<8x128xf32, #tpu.memory_space<vmem>>, vector<8x128xf32>
    tpu.vector_store %arg4[%c0_15, %c0_16], %46 {strides = array<i32>} : memref<8x128xf32, #tpu.memory_space<vmem>>, vector<8x128xf32>,
    return
  }
  func.func @transform_0(%arg0: i32, %arg1: i32) -> (i32, i32) {
    %c1_i32 = arith.constant 1 : i32
    %0 = arith.muli %arg0, %c1_i32 : i32
    %1 = arith.addi %0, %arg1 : i32
    %c0_i32 = arith.constant 0 : i32
    %2 = arith.minsi %1, %c0_i32 : i32
    %c0_i32_0 = arith.constant 0 : i32
    %c0_i32_1 = arith.constant 0 : i32
    return %2, %c0_i32_0 : i32, i32
  }
  func.func @transform_1(%arg0: i32, %arg1: i32) -> (i32, i32) {
    %c1_i32 = arith.constant 1 : i32
    %0 = arith.muli %arg0, %c1_i32 : i32
    %1 = arith.addi %0, %arg1 : i32
    %c0_i32 = arith.constant 0 : i32
    %2 = arith.minsi %1, %c0_i32 : i32
    %c0_i32_0 = arith.constant 0 : i32
    %c0_i32_1 = arith.constant 0 : i32
    return %2, %c0_i32_0 : i32, i32
  }
  func.func @transform_2(%arg0: i32, %arg1: i32) -> (i32, i32) {
    %c0_i32 = arith.constant 0 : i32
    %c0_i32_0 = arith.constant 0 : i32
    return %arg0, %c0_i32 : i32, i32
  }
}

</mosaic_0001>

<llo_original>
// kernel: tpu_custom_call.1
$region0: #{tpu_custom_call.1}
  #allocation0 [shape = 'u32[]', space=smem, size = 0x4, offset = 0x4, fixed_abs, tag = 'smem constant byte address 0x4 - core index']
  #allocation1 [shape = 'u32[72,128]{1,0:T(1,128)}', space=vmem, size = 0x9000, scoped, tag = 'internal scratch']
  %s0 = inlined_call_operand.vmem [shape: f32[8,16], index: 0, kind: input, shape index: {}]
  %s1 = inlined_call_operand.vmem [shape: s32[8,1], index: 1, kind: input, shape index: {}]
  %s2 = inlined_call_operand.hbm [shape: f32[16,128], index: 2, kind: output, shape index: {}]
  %s3 = sld [smem:[#allocation0]]
  $region45: #{tpu_custom_call.1} parent=0
    _
  %s5 = ssub.s32 1, %s3
  %s6 = scalar_select 0, %s5, %s3
  $region1: #{tpu_custom_call.1} parent=0
    #allocation2 [shape = 'u8[8192]{0}', space=vmem, size = 0x2000, scoped, tag = 'output window, operand 0']
    #allocation3 [shape = 's32[2]{0}', space=sflag, size = 0x8, scoped, tag = 'scoped memory for tpu_custom_call.1']
    %7 = vsyncpa [#allocation3], 0
    %s8 = scalar_lea.sflag [#allocation3], 1
    %9 = vsyncpa %s8, 0
    loop: start=0, step=1, limit=4
    $region2: #{tpu_custom_call.1} parent=1 // loop_pre_header
      _
    $region3: #{tpu_custom_call.1} parent=1 // loop_header
      %s11 = sphi 0, %s15
      %p12 = scmp.ge.s32.totalorder %s11, 4
      %s18 = sphi 0, %s30
      %s19 = sphi 0, %s26
      %s20 = sphi 0, %s18
      %s21 = sphi 0, %s19
      %s22 = sphi 0, %s20
      %s23 = sphi 0, %s21
      %s39 = sphi 0, %s41
      %s42 = sphi 0, %s39
      %s43 = sphi 0, %s42
      %s59 = sphi 0, %s43
      %s71 = sphi 0, %s73
      %s74 = sphi 0, %s71
      %s75 = sphi 0, %s74
      %s91 = sphi 0, %s75
      %s97 = sphi 0, %s99
      %s100 = sphi 0, %s97
      %s101 = sphi 0, %s100
      %s117 = sphi 0, %s101
    $region4: #{tpu_custom_call.1} parent=1 // loop_header_branch
      %14 = sbr.rel (%p12) target = $region8
    $region5: #{tpu_custom_call.1} parent=1 // loop_body
      %s16 = ssub.s32 %s11, 1
      %s17 = ssub.s32 %s11, 2
      %s24 = sadd.s32 1, %s19
      %p25 = scmp.ge.s32.totalorder %s24, 1
      %s26 = scalar_select %p25, 0, %s24
      %s27 = sadd.s32 1, %s18
      %s28 = scalar_select %p25, %s27, %s18
      %p29 = scmp.ge.s32.totalorder %s28, 2
      %s30 = scalar_select %p29, 0, %s28
      %s31 = sadd.s32 %s18, %s19
      %p32 = scmp.lt.s32.totalorder %s31, 0
      %s33 = scalar_select %p32, %s31, 0
      %s34 = sadd.s32 %s30, %s26
      %p35 = scmp.lt.s32.totalorder %s34, 0
      %s36 = scalar_select %p35, %s34, 0
      %s37 = ssub.s32 %s33, %s36
      %p38 = scmp.eq.s32.totalorder %s37, 0
      %s40 = sadd.s32 %s39, 1
      %s41 = scalar_select %p38, %s39, %s40
      %p44 = pneg %p38
      %p45 = scmp.eq.s32.totalorder %s11, 1
      %p46 = por %p44, %p45
      %p47 = scmp.ne.s32.totalorder %s39, %s42
      %p48 = scmp.eq.s32.totalorder %s11, 0
      %p49 = por %p47, %p48
      %p50 = scmp.ne.s32.totalorder %s39, %s42
      %p51 = scmp.eq.s32.totalorder %s16, 1
      %p52 = por %p50, %p51
      %p53 = scmp.ne.s32.totalorder %s42, %s43
      %p54 = scmp.eq.s32.totalorder %s16, 0
      %p55 = por %p53, %p54
      %p56 = scmp.ne.s32.totalorder %s42, %s43
      %p57 = scmp.eq.s32.totalorder %s17, 1
      %p58 = por %p56, %p57
      %p60 = scmp.ne.s32.totalorder %s43, %s59
      %p61 = scmp.eq.s32.totalorder %s17, 0
      %p62 = por %p60, %p61
      %s63 = sadd.s32 %s18, %s19
      %p64 = scmp.lt.s32.totalorder %s63, 0
      %s65 = scalar_select %p64, %s63, 0
      %s66 = sadd.s32 %s30, %s26
      %p67 = scmp.lt.s32.totalorder %s66, 0
      %s68 = scalar_select %p67, %s66, 0
      %s69 = ssub.s32 %s65, %s68
      %p70 = scmp.eq.s32.totalorder %s69, 0
      %s72 = sadd.s32 %s71, 1
      %s73 = scalar_select %p70, %s71, %s72
      %p76 = pneg %p70
      %p77 = scmp.eq.s32.totalorder %s11, 1
      %p78 = por %p76, %p77
      %p79 = scmp.ne.s32.totalorder %s71, %s74
      %p80 = scmp.eq.s32.totalorder %s11, 0
      %p81 = por %p79, %p80
      %p82 = scmp.ne.s32.totalorder %s71, %s74
      %p83 = scmp.eq.s32.totalorder %s16, 1
      %p84 = por %p82, %p83
      %p85 = scmp.ne.s32.totalorder %s74, %s75
      %p86 = scmp.eq.s32.totalorder %s16, 0
      %p87 = por %p85, %p86
      %p88 = scmp.ne.s32.totalorder %s74, %s75
      %p89 = scmp.eq.s32.totalorder %s17, 1
      %p90 = por %p88, %p89
      %p92 = scmp.ne.s32.totalorder %s75, %s91
      %p93 = scmp.eq.s32.totalorder %s17, 0
      %p94 = por %p92, %p93
      %s95 = ssub.s32 %s18, %s30
      %p96 = scmp.eq.s32.totalorder %s95, 0
      %s98 = sadd.s32 %s97, 1
      %s99 = scalar_select %p96, %s97, %s98
      %p102 = pneg %p96
      %p103 = scmp.eq.s32.totalorder %s11, 1
      %p104 = por %p102, %p103
      %p105 = scmp.ne.s32.totalorder %s97, %s100
      %p106 = scmp.eq.s32.totalorder %s11, 0
      %p107 = por %p105, %p106
      %p108 = scmp.ne.s32.totalorder %s97, %s100
      %p109 = scmp.eq.s32.totalorder %s16, 1
      %p110 = por %p108, %p109
      %p111 = scmp.ne.s32.totalorder %s100, %s101
      %p112 = scmp.eq.s32.totalorder %s16, 0
      %p113 = por %p111, %p112
      %p114 = scmp.ne.s32.totalorder %s100, %s101
      %p115 = scmp.eq.s32.totalorder %s17, 1
      %p116 = por %p114, %p115
      %p118 = scmp.ne.s32.totalorder %s101, %s117
      %p119 = scmp.eq.s32.totalorder %s17, 0
      %p120 = por %p118, %p119
      %p121 = scmp.le.s32.totalorder 1, %s11
      %p122 = scmp.lt.s32.totalorder %s11, 3
      %p123 = pnand %p121, %p122
      %p124 = pneg %p123
      // Predicated region
      $region9: #{tpu_custom_call.1} parent=5 // pred_check
        _
      $region10: #{tpu_custom_call.1} parent=5 // pred_check_branch
        %126 = sbr.rel (%p123) target = $region12
      $region11: #{tpu_custom_call.1} parent=5 // pred_region
        %s127 = ssub.s32 %s11, 1
      $region12: #{tpu_custom_call.1} parent=5 // pred_fallthru
        _
      %p128 = scmp.lt.s32.totalorder %s11, 2
      // Predicated region
      $region13: #{tpu_custom_call.1} parent=5 // pred_check
        %p129 = pneg %p128
      $region14: #{tpu_custom_call.1} parent=5 // pred_check_branch
        %131 = sbr.rel (%p129) target = $region16
      $region15: #{tpu_custom_call.1} parent=5 // pred_region
        // Predicated region
        $region17: #{tpu_custom_call.1} parent=15 // pred_check
          %p132 = pneg %p49
        $region18: #{tpu_custom_call.1} parent=15 // pred_check_branch
          %134 = sbr.rel (%p132) target = $region20
        $region19: #{tpu_custom_call.1} parent=15 // pred_region
          %s135 = sadd.s32 %s18, %s19
          %p136 = scmp.lt.s32.totalorder %s135, 0
          %s137 = scalar_select %p136, %s135, 0
          %p138 = scmp.lt.s32.totalorder %s137, 0
          %s139 = scalar_select %p138, %s137, 0
          %s140 = smul.addr %s139, 8
          %s141 = scalar_lea.vmem %s0, %s140
          %s142 = sadd.s32 %s18, %s19
          %p143 = scmp.lt.s32.totalorder %s142, 0
          %s144 = scalar_select %p143, %s142, 0
        $region20: #{tpu_custom_call.1} parent=15 // pred_fallthru
          _
        // Predicated region
        $region21: #{tpu_custom_call.1} parent=15 // pred_check
          %p145 = pneg %p81
        $region22: #{tpu_custom_call.1} parent=15 // pred_check_branch
          %147 = sbr.rel (%p145) target = $region24
        $region23: #{tpu_custom_call.1} parent=15 // pred_region
          %s148 = sadd.s32 %s18, %s19
          %p149 = scmp.lt.s32.totalorder %s148, 0
          %s150 = scalar_select %p149, %s148, 0
          %p151 = scmp.lt.s32.totalorder %s150, 0
          %s152 = scalar_select %p151, %s150, 0
          %s153 = smul.addr %s152, 8
          %s154 = scalar_lea.vmem %s1, %s153
          %s155 = sadd.s32 %s18, %s19
          %p156 = scmp.lt.s32.totalorder %s155, 0
          %s157 = scalar_select %p156, %s155, 0
        $region24: #{tpu_custom_call.1} parent=15 // pred_fallthru
          _
      $region16: #{tpu_custom_call.1} parent=5 // pred_fallthru
        _
      %p158 = scmp.le.s32.totalorder 1, %s11
      %p159 = scmp.lt.s32.totalorder %s11, 3
      %p160 = pnand %p158, %p159
      %p161 = pneg %p160
      // Predicated region
      $region25: #{tpu_custom_call.1} parent=5 // pred_check
        _
      $region26: #{tpu_custom_call.1} parent=5 // pred_check_branch
        %163 = sbr.rel (%p160) target = $region28
      $region27: #{tpu_custom_call.1} parent=5 // pred_region
        %s164 = ssub.s32 %s11, 1
        %s165 = sadd.s32 %s20, %s21
        %p166 = scmp.lt.s32.totalorder %s165, 0
        %s167 = scalar_select %p166, %s165, 0
        %p168 = scmp.lt.s32.totalorder %s167, 0
        %s169 = scalar_select %p168, %s167, 0
        %s170 = smul.addr %s169, 8
        %s171 = scalar_lea.vmem %s0, %s170
        %p172 = pneg %p55
        %p173 = pneg %p52
        %s174 = sadd.s32 %s20, %s21
        %p175 = scmp.lt.s32.totalorder %s174, 0
        %s176 = scalar_select %p175, %s174, 0
        %p177 = scmp.lt.s32.totalorder %s176, 0
        %s178 = scalar_select %p177, %s176, 0
        %s179 = smul.addr %s178, 8
        %s180 = scalar_lea.vmem %s1, %s179
        %p181 = pneg %p87
        %p182 = pneg %p84
        %p183 = pneg %p113
        %p184 = pneg %p110
        %s185 = sand.u32 %s100, 1
        %s186 = scalar_lea.sflag [#allocation3], %s185
        %s187 = sand.u32 %s100, 1
        %s188 = smul.addr %s187, 8
        %s189 = scalar_lea.vmem [#allocation2], %s188
        %s190 = sadd.s32 %s20, %s21
        %p191 = scmp.lt.s32.totalorder %s190, 0
        %s192 = scalar_select %p191, %s190, 0
        %p193 = scmp.lt.s32.totalorder %s192, 0
        %s194 = scalar_select %p193, %s192, 0
        %s195 = smul.addr %s194, 8
        %s196 = scalar_lea.vmem %s0, %s195
        %s197 = sadd.s32 %s20, %s21
        %p198 = scmp.lt.s32.totalorder %s197, 0
        %s199 = scalar_select %p198, %s197, 0
        %s200 = sadd.s32 %s20, %s21
        %p201 = scmp.lt.s32.totalorder %s200, 0
        %s202 = scalar_select %p201, %s200, 0
        %p203 = scmp.lt.s32.totalorder %s202, 0
        %s204 = scalar_select %p203, %s202, 0
        %s205 = smul.addr %s204, 8
        %s206 = scalar_lea.vmem %s1, %s205
        %s207 = sadd.s32 %s20, %s21
        %p208 = scmp.lt.s32.totalorder %s207, 0
        %s209 = scalar_select %p208, %s207, 0
        %p210 = scmp.eq.s32.totalorder %s21, 0
        // Predicated region
        $region29: #{tpu_custom_call.1} parent=27 // pred_check
          %p211 = pneg %p210
        $region30: #{tpu_custom_call.1} parent=27 // pred_check_branch
          %213 = sbr.rel (%p211) target = $region32
        $region31: #{tpu_custom_call.1} parent=27 // pred_region
          %214 = vst [vmem:[%s189] sm:$0xff] 0.0
        $region32: #{tpu_custom_call.1} parent=27 // pred_fallthru
          _
        %v215 = vld [vmem:[%s196] sm:$0xff]
        %v216 = vld [vmem:[%s206] sm:$0xff]
        %vm217 = vcmask 130048
        %v218 = vsel %vm217, %v215, -inf
        %219 = vmax.xlane.f32.xlu0 %v218
        %v220 = vpop.xlane.xlu0 %219
        %v221 = vsub.f32 %v215, %v220
        %v222 = vmul.f32 %v221, 1.442695
        %v223 = vpow.pop %v222
        %v224 = vsel %vm217, %v223, 0.0
        %225 = vadd.xlane.f32.xlu0 %v224
        %v226 = vpop.xlane.xlu0 %225
        %v227 = vlaneseq
        %v228 = vand.u32 %v227, 127
        %229 = vset.pattern.permute.xlu0 0
        %230 = vperm.xlu0 %229, %v216
        %v231 = vpop.permute.xlu0 %230
        %vm232 = vcmp.eq.s32.totalorder %v228, %v231
        %v233 = vsel %vm232, %v221, 0.0
        %v234 = vsel %vm217, %v233, 0.0
        %235 = vadd.xlane.f32.xlu0 %v234
        %v236 = vpop.xlane.xlu0 %235
        %v237 = vlog2.pop %v226
        %v238 = vmul.f32 %v237, 0.6931472
        %v239 = vsub.f32 %v238, %v236
        %v240 = vsub.f32 0.0, %v239
        %v241 = vmul.f32 %v240, 1.442695
        %v242 = vpow.pop %v241
        %v243 = vsub.f32 1.0, %v242
        %v244 = vmul.f32 %v243, 0.25
        %v245 = vmul.f32 %v244, %v243
        %v246 = vmul.f32 %v245, %v239
        %s247 = sadd.s32 %s20, %s21
        %s248 = smul.u32 %s247, 8
        %v249 = vlaneseq
        %v250 = vshrl.u32 %v249, 7
        %v251 = vstv %s248
        %v252 = vadd.s32 %v251, %v250
        %vm253 = vcmp.lt.s32.totalorder %v252, 8
        %v254 = vsel %vm253, %v246, 0.0
        %v255 = vld [vmem:[%s189] sm:$0xff]
        %vm256 = vcmask 7168
        %v257 = vsel %vm256, %v254, 0.0
        %258 = vadd.xlane.f32.xlu0 %v257
        %v259 = vpop.xlane.xlu0 %258
        %v260 = vrot.slane %v259, 4
        %v261 = vadd.f32 %v259, %v260
        %v262 = vrot.slane %v261, 2
        %v263 = vadd.f32 %v261, %v262
        %v264 = vrot.slane %v263, 1
        %v265 = vadd.f32 %v263, %v264
        %s266 = vtos %v265
        %v267 = vstv %s266
        %v268 = vadd.f32 %v255, %v267
        %269 = vst [vmem:[%s189] sm:$0xff] %v268
        %s270 = sand.u32 %s100, 1
        %s271 = scalar_lea.sflag [#allocation3], %s270
        %s272 = sand.u32 %s100, 1
        %s273 = smul.addr %s272, 8
        %s274 = scalar_lea.vmem [#allocation2], %s273
        // Predicated region
        $region33: #{tpu_custom_call.1} parent=27 // pred_check
          %p275 = pneg %p110
        $region34: #{tpu_custom_call.1} parent=27 // pred_check_branch
          %277 = sbr.rel (%p275) target = $region36
        $region35: #{tpu_custom_call.1} parent=27 // pred_region
          %279 = vsyncadd %s271, 0
          %s280 = smul.addr %s20, 8
          %s281 = scalar_lea.hbm %s2, %s280
          %s283 = sshll.u32 %s274, 4
          %s284 = int_to_ptr.vmem [resolvable:$true] %s283
          %s285 = sshll.u32 %s281, 4
          %s286 = int_to_ptr.hbm [resolvable:$true] %s285
          %288 = dma.vmem_to_hbm [thread:$0]  %s284, 128, %s286, %s271
        $region36: #{tpu_custom_call.1} parent=27 // pred_fallthru
          _
      $region28: #{tpu_custom_call.1} parent=5 // pred_fallthru
        _
      %p289 = scmp.le.s32.totalorder 2, %s11
      // Predicated region
      $region37: #{tpu_custom_call.1} parent=5 // pred_check
        %p290 = pneg %p289
      $region38: #{tpu_custom_call.1} parent=5 // pred_check_branch
        %292 = sbr.rel (%p290) target = $region40
      $region39: #{tpu_custom_call.1} parent=5 // pred_region
        %s293 = ssub.s32 %s11, 2
        // Predicated region
        $region41: #{tpu_custom_call.1} parent=39 // pred_check
          %p294 = pneg %p116
        $region42: #{tpu_custom_call.1} parent=39 // pred_check_branch
          %296 = sbr.rel (%p294) target = $region44
        $region43: #{tpu_custom_call.1} parent=39 // pred_region
          %s297 = sand.u32 %s101, 1
          %s298 = scalar_lea.sflag [#allocation3], %s297
          %s299 = sand.u32 %s101, 1
          %s300 = smul.addr %s299, 8
          %s301 = scalar_lea.vmem [#allocation2], %s300
          %303 = dma.done %s298, 128
        $region44: #{tpu_custom_call.1} parent=39 // pred_fallthru
          _
      $region40: #{tpu_custom_call.1} parent=5 // pred_fallthru
        _
    $region6: #{tpu_custom_call.1} parent=1 // loop_footer
      %s15 = sadd.s32 1, %s11
    $region7: #{tpu_custom_call.1} parent=1 // loop_footer_branch
      %10 = sbr.rel target = $region3
    $region8: #{tpu_custom_call.1} parent=1 // loop_exit
      _
    %304 = vsyncpa [#allocation3], 1
    %s305 = scalar_lea.sflag [#allocation3], 1
    %306 = vsyncpa %s305, 1

</llo_original>
